<compile_context>
chip_gen: v6e
topology: v6e:2x2x1
jax: 0.10.0
libtpu: 0.0.40
codegen_flags: <defaults>
</compile_context>

<pallas_src>
import functools

import jax
import jax.numpy as jnp
from jax.experimental import pallas as pl
from jax.experimental.pallas import tpu as pltpu

_LANE = 128
_SUBLANE = 8
_NEG_PAD = -1e30  # Python float -> jaxpr literal (NOT a captured jnp constant)


def _round_up(x, m):
    return ((x + m - 1) // m) * m


def _row_tiling(n, max_tile_rows):
    """Pick (tile_rows, padded_rows, n_tiles) for N rows."""
    n_rounded = _round_up(max(n, 1), _SUBLANE)
    tile = min(max_tile_rows, n_rounded)
    # Ensure >= 2 grid steps whenever N allows it so dimension_semantics=
    # ("parallel",) can shard row tiles across v7x's 2 TensorCores.
    if n_rounded // tile < 2 and n_rounded >= 2 * _SUBLANE:
        tile = -(-n // 2)  # ceil(N / 2)
    tile = max(_SUBLANE, _round_up(tile, _SUBLANE))
    n_pad = _round_up(n_rounded, tile)
    return tile, n_pad, n_pad // tile


# ---------------------------------------------------------------------------
# Kernel bodies
# ---------------------------------------------------------------------------

def _gather_logits(idx, table):
    """Embedding lookup as one-hot(idx) @ table on the MXU.

    TODO(synk): for a large (word-level) vocab, replace the full-table one-hot
    matmul with a scalar-prefetch row gather (PrefetchScalarGridSpec +
    pl.Element(1) table blocks) so the (V, V) table never has to be fully
    VMEM-resident (matters on v7x's 64 MiB VMEM).
    """
    n = idx.shape[0]
    vp = table.shape[1]
    col = jax.lax.broadcasted_iota(jnp.int32, (n, vp), 1)
    onehot = (col == idx).astype(table.dtype)                              # (n, Vp)
    logits = jnp.dot(onehot, table, preferred_element_type=jnp.float32)    # (n, Vp)
    return col, logits


def _tile_ce_sum(col, logits, tgt, row_start, n_valid):
    """Sum of per-row cross-entropy losses over valid rows of this tile.

    Padded vocab lanes already hold -1e30 (table pre-padded in the wrapper),
    so no column mask is needed before the logsumexp.  Padded rows
    (global row >= n_valid) are masked out of the sum here.
    """
    n = logits.shape[0]
    m = jnp.max(logits, axis=-1, keepdims=True)                            # (n, 1)
    lse = m + jnp.log(jnp.sum(jnp.exp(logits - m), axis=-1, keepdims=True))
    tgt_logit = jnp.sum(jnp.where(col == tgt, logits, 0.0),
                        axis=-1, keepdims=True)                            # (n, 1)
    per_row = lse - tgt_logit
    row = row_start + jax.lax.broadcasted_iota(jnp.int32, (n, 1), 0)
    per_row = jnp.where(row < n_valid, per_row, 0.0)
    return jnp.sum(per_row)


def _kernel_logits_loss(idx_ref, tgt_ref, table_ref, logits_ref, loss_ref, *,
                        tile_rows, n_valid):
    col, logits = _gather_logits(idx_ref[...], table_ref[...])
    logits_ref[...] = logits
    total = _tile_ce_sum(col, logits, tgt_ref[...],
                         pl.program_id(0) * tile_rows, n_valid)
    # One lane-dense (1, 1, 128) block per tile: scalar broadcast over lanes.
    loss_ref[...] = jnp.full(loss_ref.shape, total, dtype=jnp.float32)


def _kernel_loss_only(idx_ref, tgt_ref, table_ref, loss_ref, *,
                      tile_rows, n_valid):
    col, logits = _gather_logits(idx_ref[...], table_ref[...])
    total = _tile_ce_sum(col, logits, tgt_ref[...],
                         pl.program_id(0) * tile_rows, n_valid)
    loss_ref[...] = jnp.full(loss_ref.shape, total, dtype=jnp.float32)


def _kernel_logits_only(idx_ref, table_ref, logits_ref):
    # Inference path: no softmax / cross-entropy work at all.
    logits_ref[...] = _gather_logits(idx_ref[...], table_ref[...])[1]


# ---------------------------------------------------------------------------
# Wrapper
# ---------------------------------------------------------------------------

def bigram_forward(idx, targets, table, *, return_logits=True,
                   compact_logits=True, max_tile_rows=2048):
    """idx, targets: (B, T) int (targets may be None); table: (V, V) float32.

    Matches the PyTorch module (with compact_logits=True, the default):
      targets given:  returns (logits (B*T, V) f32, loss scalar f32);
                      logits is None if return_logits=False (loss-only fast path).
      targets None:   returns (logits (B, T, V) f32, None).

    compact_logits=False skips the wrapper-side [:N, :V] compaction copy and
    returns the row/lane-padded (n_pad, Vp) logits; slice lazily at the point
    of use (padded vocab columns hold -1e30, padded rows hold row-0 logits).
    """
    B, T = idx.shape
    V = table.shape[0]
    N = B * T

    vp = _round_up(V, _LANE)
    tile, n_pad, n_tiles = _row_tiling(N, max_tile_rows)

    # Pad-only-when-needed fast paths; padded vocab columns get -1e30 so the
    # gathered logits there are already "masked" for the logsumexp.
    table_f32 = table.astype(jnp.float32)
    if vp == V:
        table_p = table_f32
    else:
        table_p = jnp.pad(table_f32, ((0, vp - V), (0, vp - V)),
                          constant_values=_NEG_PAD)

    idx_flat = idx.reshape(N, 1).astype(jnp.int32)
    if n_pad != N:
        idx_flat = jnp.pad(idx_flat, ((0, n_pad - N), (0, 0)))

    tok_spec = pl.BlockSpec((tile, 1), lambda i: (i, 0))
    # Constant index_map: the (padded) table is DMA'd once and stays
    # VMEM-resident across all row tiles.
    # TODO(synk): for a large vocab, single-buffer this spec
    # (pipeline_mode=pl.Buffered(1)) -- negligible at Vp=128 (64 KiB) but it
    # halves table VMEM once V grows (critical on v7x's 64 MiB VMEM).
    table_spec = pl.BlockSpec((vp, vp), lambda i: (0, 0))
    logits_spec = pl.BlockSpec((tile, vp), lambda i: (i, 0))
    cparams = pltpu.CompilerParams(
        dimension_semantics=("parallel",),      # row tiles independent -> 2 TCs on v7x
        vmem_limit_bytes=32 * 1024 * 1024,
    )

    if targets is None:
        logits_p = pl.pallas_call(
            _kernel_logits_only,
            grid=(n_tiles,),
            in_specs=[tok_spec, table_spec],
            out_specs=logits_spec,
            out_shape=jax.ShapeDtypeStruct((n_pad, vp), jnp.float32),
            compiler_params=cparams,
        )(idx_flat, table_p)
        if not compact_logits:
            return logits_p, None
        return logits_p[:N, :V].reshape(B, T, V), None

    tgt_flat = targets.reshape(N, 1).astype(jnp.int32)
    if n_pad != N:
        tgt_flat = jnp.pad(tgt_flat, ((0, n_pad - N), (0, 0)))

    # Per-tile partial CE sums: lane-dense (1, 1, 128) blocks (no masked
    # vst.msk narrow stores, no wrapper pass over n_pad per-row losses).
    loss_shape = jax.ShapeDtypeStruct((n_tiles, 1, _LANE), jnp.float32)
    loss_spec = pl.BlockSpec((1, 1, _LANE), lambda i: (i, 0, 0))

    if return_logits:
        logits_p, partial = pl.pallas_call(
            functools.partial(_kernel_logits_loss, tile_rows=tile, n_valid=N),
            grid=(n_tiles,),
            in_specs=[tok_spec, tok_spec, table_spec],
            out_specs=(logits_spec, loss_spec),
            out_shape=(jax.ShapeDtypeStruct((n_pad, vp), jnp.float32), loss_shape),
            compiler_params=cparams,
        )(idx_flat, tgt_flat, table_p)
        loss = jnp.sum(partial[:, 0, 0]) / N
        if not compact_logits:
            return logits_p, loss
        return logits_p[:N, :V], loss

    # Loss-only training fast path: no (N, Vp) logits HBM writeback at all.
    partial = pl.pallas_call(
        functools.partial(_kernel_loss_only, tile_rows=tile, n_valid=N),
        grid=(n_tiles,),
        in_specs=[tok_spec, tok_spec, table_spec],
        out_specs=loss_spec,
        out_shape=loss_shape,
        compiler_params=cparams,
    )(idx_flat, tgt_flat, table_p)
    loss = jnp.sum(partial[:, 0, 0]) / N
    return None, loss


def bigram_last_logits(idx, table, *, max_tile_rows=2048):
    """Generation helper: logits of the last position only, shape (B, V).

    generate() only needs logits[:, -1, :]; computing only the last step cuts
    rows (and logits HBM traffic) by T x versus the full forward.
    """
    logits, _ = bigram_forward(idx[:, -1:], None, table,
                               compact_logits=True, max_tile_rows=max_tile_rows)
    return logits[:, 0, :]


def bigram_forward_ref(idx, targets, table):
    """Pure-JAX reference for correctness checking."""
    logits = table[idx.reshape(-1)]                       # (B*T, V)
    lse = jax.nn.logsumexp(logits, axis=-1)               # (B*T,)
    tgt = targets.reshape(-1)
    tgt_logit = jnp.take_along_axis(logits, tgt[:, None], axis=-1)[:, 0]
    loss = jnp.mean(lse - tgt_logit)
    return logits, loss


if __name__ == "__main__":
    # Small shapes consistent with the module: batch=2, block_size(T)=8, vocab=65.
    B, T, V = 2, 8, 65

    key = jax.random.PRNGKey(0)
    k_tab, k_idx, k_tgt = jax.random.split(key, 3)

    table = jax.random.normal(k_tab, (V, V), dtype=jnp.float32)
    idx = jax.random.randint(k_idx, (B, T), 0, V, dtype=jnp.int32)
    targets = jax.random.randint(k_tgt, (B, T), 0, V, dtype=jnp.int32)

    ref_logits, ref_loss = bigram_forward_ref(idx, targets, table)

    # 1) Full forward (module-parity shapes): logits (B*T, V) + scalar loss.
    logits, loss = bigram_forward(idx, targets, table)
    jax.block_until_ready((logits, loss))
    assert logits.shape == (B * T, V)
    assert jnp.allclose(logits, ref_logits, atol=1e-5), "logits mismatch"
    assert jnp.allclose(loss, ref_loss, atol=1e-5), "loss mismatch"

    # 2) Loss-only training fast path (no logits HBM writeback).
    _, loss_only = bigram_forward(idx, targets, table, return_logits=False)
    jax.block_until_ready(loss_only)
    assert jnp.allclose(loss_only, ref_loss, atol=1e-5), "loss-only mismatch"

    # 3) Padded-logits fast path (no wrapper compaction copy; slice at use site).
    logits_pad, loss_pad = bigram_forward(idx, targets, table, compact_logits=False)
    jax.block_until_ready((logits_pad, loss_pad))
    assert jnp.allclose(logits_pad[:B * T, :V], ref_logits, atol=1e-5), \
        "padded logits mismatch"
    assert jnp.allclose(loss_pad, ref_loss, atol=1e-5), "padded-path loss mismatch"

    # 4) targets=None inference path (logits-only kernel, (B, T, V), loss None).
    logits_inf, loss_inf = bigram_forward(idx, None, table)
    jax.block_until_ready(logits_inf)
    assert logits_inf.shape == (B, T, V) and loss_inf is None
    assert jnp.allclose(logits_inf.reshape(B * T, V), ref_logits, atol=1e-5), \
        "inference logits mismatch"

    # 5) Generation helper: last-position logits only, (B, V).
    last = bigram_last_logits(idx, table)
    jax.block_until_ready(last)
    assert last.shape == (B, V)
    assert jnp.allclose(last, table[idx[:, -1]], atol=1e-5), "last-step logits mismatch"

    print("KERNEL_OK")
</pallas_src>

<mosaic_0001>
module attributes {stable_mosaic.version = 11 : i64} {
  func.func @_kernel_logits_loss(%arg0: i32, %arg1: memref<8x1xi32, #tpu.memory_space<vmem>>, %arg2: memref<8x1xi32, #tpu.memory_space<vmem>>, %arg3: memref<128x128xf32, #tpu.memory_space<vmem>>, %arg4: memref<8x128xf32, #tpu.memory_space<vmem>>, %arg5: memref<1x1x128xf32, #tpu.memory_space<vmem>>) attributes {dimension_semantics = [#tpu.dimension_semantics<parallel>], iteration_bounds = array<i64: 2>, scalar_prefetch = 0 : i64, scratch_operands = 0 : i64, tpu.core_type = #tpu.core_type<tc>, window_params = [{transform_indices = @transform_0, window_bounds = array<i64: 8, 1>}, {transform_indices = @transform_1, window_bounds = array<i64: 8, 1>}, {pipeline_mode = #tpu.pipeline_mode<synchronous>, transform_indices = @transform_2, window_bounds = array<i64: 128, 128>}, {transform_indices = @transform_3, window_bounds = array<i64: 8, 128>}, {transform_indices = @transform_4, window_bounds = array<i64: 1, 1, 128>}]} {
    %c0 = arith.constant 0 : index
    %c0_0 = arith.constant 0 : index
    %0 = vector.load %arg1[%c0, %c0_0] : memref<8x1xi32, #tpu.memory_space<vmem>>, vector<8x1xi32>
    %c0_1 = arith.constant 0 : index
    %c0_2 = arith.constant 0 : index
    %1 = vector.load %arg3[%c0_1, %c0_2] : memref<128x128xf32, #tpu.memory_space<vmem>>, vector<128x128xf32>
    %2 = tpu.iota {dimensions = array<i32: 1>} : vector<8x128xi32>
    %3 = vector.broadcast %0 : vector<8x1xi32> to vector<8x128xi32>
    %4 = arith.cmpi eq, %2, %3 : vector<8x128xi32>
    %5 = arith.extui %4 : vector<8x128xi1> to vector<8x128xi32>
    %6 = arith.sitofp %5 : vector<8x128xi32> to vector<8x128xf32>
    %cst = arith.constant dense<0.000000e+00> : vector<8x128xf32>
    %7 = tpu.matmul %6, %1, %cst {dimension_numbers = #tpu.dot_dimension_numbers<[1], [0], [0], [1], [0, 0, 1, 1], [], []>} : vector<8x128xf32>, vector<128x128xf32>, vector<8x128xf32> -> vector<8x128xf32>
    %c0_3 = arith.constant 0 : index
    %c0_4 = arith.constant 0 : index
    %8 = vector.load %arg4[%c0_3, %c0_4] : memref<8x128xf32, #tpu.memory_space<vmem>>, vector<8x128xf32>
    tpu.vector_store %arg4[%c0_3, %c0_4], %7 {strides = array<i32>} : memref<8x128xf32, #tpu.memory_space<vmem>>, vector<8x128xf32>,
    %c0_5 = arith.constant 0 : index
    %c0_6 = arith.constant 0 : index
    %9 = vector.load %arg2[%c0_5, %c0_6] : memref<8x1xi32, #tpu.memory_space<vmem>>, vector<8x1xi32>
    %c8_i32 = arith.constant 8 : i32
    %10 = arith.muli %arg0, %c8_i32 : i32
    %cst_7 = arith.constant dense<0xFF800000> : vector<8xf32>
    %11 = vector.multi_reduction <maximumf>, %7, %cst_7 [1] : vector<8x128xf32> to vector<8xf32>
    %12 = vector.shape_cast %11 : vector<8xf32> to vector<8x1xf32>
    %13 = vector.broadcast %12 : vector<8x1xf32> to vector<8x128xf32>
    %14 = arith.subf %7, %13 : vector<8x128xf32>
    %15 = math.exp %14 : vector<8x128xf32>
    %cst_8 = arith.constant dense<0.000000e+00> : vector<8xf32>
    %16 = vector.multi_reduction <add>, %15, %cst_8 [1] : vector<8x128xf32> to vector<8xf32>
    %17 = vector.shape_cast %16 : vector<8xf32> to vector<8x1xf32>
    %18 = math.log %17 : vector<8x1xf32>
    %19 = arith.addf %12, %18 : vector<8x1xf32>
    %20 = vector.broadcast %9 : vector<8x1xi32> to vector<8x128xi32>
    %21 = arith.cmpi eq, %2, %20 : vector<8x128xi32>
    %cst_9 = arith.constant 0.000000e+00 : f32
    %22 = vector.broadcast %cst_9 : f32 to vector<8x128xf32>
    %23 = arith.select %21, %7, %22 : vector<8x128xi1>, vector<8x128xf32>
    %cst_10 = arith.constant dense<0.000000e+00> : vector<8xf32>
    %24 = vector.multi_reduction <add>, %23, %cst_10 [1] : vector<8x128xf32> to vector<8xf32>
    %25 = vector.shape_cast %24 : vector<8xf32> to vector<8x1xf32>
    %26 = arith.subf %19, %25 : vector<8x1xf32>
    %27 = tpu.iota {dimensions = array<i32: 0>} : vector<8x1xi32>
    %28 = vector.broadcast %10 : i32 to vector<8x1xi32>
    %29 = arith.addi %28, %27 : vector<8x1xi32>
    %c16_i32 = arith.constant 16 : i32
    %30 = vector.broadcast %c16_i32 : i32 to vector<8x1xi32>
    %31 = arith.cmpi slt, %29, %30 : vector<8x1xi32>
    %cst_11 = arith.constant 0.000000e+00 : f32
    %32 = vector.broadcast %cst_11 : f32 to vector<8x1xf32>
    %33 = arith.select %31, %26, %32 : vector<8x1xi1>, vector<8x1xf32>
    %34 = vector.shape_cast %33 : vector<8x1xf32> to vector<1x8x1xf32>
    %cst_12 = arith.constant dense<0.000000e+00> : vector<1xf32>
    %35 = vector.multi_reduction <add>, %34, %cst_12 [1, 2] : vector<1x8x1xf32> to vector<1xf32>
    %36 = vector.shape_cast %35 : vector<1xf32> to vector<1x1x1xf32>
    %37 = vector.extract %36[0, 0, 0] : f32 from vector<1x1x1xf32>
    %38 = vector.broadcast %37 : f32 to vector<1x1x128xf32>
    %c0_13 = arith.constant 0 : index
    %c0_14 = arith.constant 0 : index
    %c0_15 = arith.constant 0 : index
    %39 = vector.load %arg5[%c0_13, %c0_14, %c0_15] : memref<1x1x128xf32, #tpu.memory_space<vmem>>, vector<1x1x128xf32>
    tpu.vector_store %arg5[%c0_13, %c0_14, %c0_15], %38 {strides = array<i32>} : memref<1x1x128xf32, #tpu.memory_space<vmem>>, vector<1x1x128xf32>,
    return
  }
  func.func @transform_0(%arg0: i32) -> (i32, i32) {
    %c0_i32 = arith.constant 0 : i32
    %c0_i32_0 = arith.constant 0 : i32
    return %arg0, %c0_i32 : i32, i32
  }
  func.func @transform_1(%arg0: i32) -> (i32, i32) {
    %c0_i32 = arith.constant 0 : i32
    %c0_i32_0 = arith.constant 0 : i32
    return %arg0, %c0_i32 : i32, i32
  }
  func.func @transform_2(%arg0: i32) -> (i32, i32) {
    %c0_i32 = arith.constant 0 : i32
    %c0_i32_0 = arith.constant 0 : i32
    %c0_i32_1 = arith.constant 0 : i32
    return %c0_i32, %c0_i32_0 : i32, i32
  }
  func.func @transform_3(%arg0: i32) -> (i32, i32) {
    %c0_i32 = arith.constant 0 : i32
    %c0_i32_0 = arith.constant 0 : i32
    return %arg0, %c0_i32 : i32, i32
  }
  func.func @transform_4(%arg0: i32) -> (i32, i32, i32) {
    %c0_i32 = arith.constant 0 : i32
    %c0_i32_0 = arith.constant 0 : i32
    %c0_i32_1 = arith.constant 0 : i32
    return %arg0, %c0_i32, %c0_i32_0 : i32, i32, i32
  }
}

</mosaic_0001>

<llo_original>
// kernel: tpu_custom_call.1
$region0: #{tpu_custom_call.1}
  #allocation0 [shape = 'u32[]', space=smem, size = 0x4, offset = 0x4, fixed_abs, tag = 'smem constant byte address 0x4 - core index']
  #allocation1 [shape = 'u32[144,128]{1,0:T(1,128)}', space=vmem, size = 0x12000, scoped, tag = 'internal scratch']
  %s0 = inlined_call_operand.vmem [shape: s32[16,1], index: 0, kind: input, shape index: {}]
  %s1 = inlined_call_operand.vmem [shape: s32[16,1], index: 1, kind: input, shape index: {}]
  %s2 = inlined_call_operand.hbm [shape: f32[128,128], index: 2, kind: input, shape index: {}]
  %s3 = inlined_call_operand.hbm [shape: f32[16,128], index: 3, kind: output, shape index: {0}]
  %s4 = inlined_call_operand.hbm [shape: f32[2,1,128], index: 4, kind: output, shape index: {1}]
  %5 = xla_tuple %s3, %s4
  %s6 = sld [smem:[#allocation0]]
  $region57: #{tpu_custom_call.1} parent=0
    _
  %s8 = ssub.s32 1, %s6
  %s9 = scalar_select 0, %s8, %s6
  $region1: #{tpu_custom_call.1} parent=0
    #allocation2 [shape = 'u8[65536]{0}', space=vmem, size = 0x10000, scoped, tag = 'input window, operand 2, single buffered']
    #allocation3 [shape = 's32[2]{0}', space=sflag, size = 0x8, scoped, tag = 'scoped memory for tpu_custom_call.1']
    #allocation4 [shape = 's32[2]{0}', space=sflag, size = 0x8, scoped, tag = 'scoped memory for tpu_custom_call.1']
    #allocation5 [shape = 'u8[8192]{0}', space=vmem, size = 0x2000, scoped, tag = 'output window, operand 0']
    #allocation6 [shape = 'u8[1024]{0}', space=vmem, size = 0x400, scoped, tag = 'output window, operand 1']
    #allocation7 [shape = 's32[2]{0}', space=sflag, size = 0x8, scoped, tag = 'scoped memory for tpu_custom_call.1']
    %10 = vsyncpa [#allocation3], 0
    %11 = vsyncpa [#allocation4], 0
    %s12 = scalar_lea.sflag [#allocation4], 1
    %13 = vsyncpa %s12, 0
    %14 = vsyncpa [#allocation7], 0
    %s15 = scalar_lea.sflag [#allocation7], 1
    %16 = vsyncpa %s15, 0
    loop: start=0, step=1, limit=4
    $region2: #{tpu_custom_call.1} parent=1 // loop_pre_header
      _
    $region3: #{tpu_custom_call.1} parent=1 // loop_header
      %s18 = sphi 0, %s22
      %p19 = scmp.ge.s32.totalorder %s18, 4
      %s28 = sphi 0, %s30
      %s31 = sphi 0, %s28
      %s32 = sphi 0, %s31
      %s48 = sphi 0, %s32
      %s54 = sphi 0, %s56
      %s57 = sphi 0, %s54
      %s58 = sphi 0, %s57
      %s74 = sphi 0, %s58
      %s78 = sphi 0, %s78
      %s80 = sphi 0, %s78
      %s81 = sphi 0, %s80
      %s95 = sphi 0, %s81
      %s101 = sphi 0, %s103
      %s104 = sphi 0, %s101
      %s105 = sphi 0, %s104
      %s121 = sphi 0, %s105
      %s127 = sphi 0, %s129
      %s130 = sphi 0, %s127
      %s131 = sphi 0, %s130
      %s147 = sphi 0, %s131
    $region4: #{tpu_custom_call.1} parent=1 // loop_header_branch
      %21 = sbr.rel (%p19) target = $region8
    $region5: #{tpu_custom_call.1} parent=1 // loop_body
      %s23 = ssub.s32 %s18, 1
      %s24 = ssub.s32 %s18, 2
      %s25 = sadd.s32 %s18, 1
      %s26 = ssub.s32 %s18, %s25
      %p27 = scmp.eq.s32.totalorder %s26, 0
      %s29 = sadd.s32 %s28, 1
      %s30 = scalar_select %p27, %s28, %s29
      %p33 = pneg %p27
      %p34 = scmp.eq.s32.totalorder %s18, 1
      %p35 = por %p33, %p34
      %p36 = scmp.ne.s32.totalorder %s28, %s31
      %p37 = scmp.eq.s32.totalorder %s18, 0
      %p38 = por %p36, %p37
      %p39 = scmp.ne.s32.totalorder %s28, %s31
      %p40 = scmp.eq.s32.totalorder %s23, 1
      %p41 = por %p39, %p40
      %p42 = scmp.ne.s32.totalorder %s31, %s32
      %p43 = scmp.eq.s32.totalorder %s23, 0
      %p44 = por %p42, %p43
      %p45 = scmp.ne.s32.totalorder %s31, %s32
      %p46 = scmp.eq.s32.totalorder %s24, 1
      %p47 = por %p45, %p46
      %p49 = scmp.ne.s32.totalorder %s32, %s48
      %p50 = scmp.eq.s32.totalorder %s24, 0
      %p51 = por %p49, %p50
      %s52 = ssub.s32 %s18, %s25
      %p53 = scmp.eq.s32.totalorder %s52, 0
      %s55 = sadd.s32 %s54, 1
      %s56 = scalar_select %p53, %s54, %s55
      %p59 = pneg %p53
      %p60 = scmp.eq.s32.totalorder %s18, 1
      %p61 = por %p59, %p60
      %p62 = scmp.ne.s32.totalorder %s54, %s57
      %p63 = scmp.eq.s32.totalorder %s18, 0
      %p64 = por %p62, %p63
      %p65 = scmp.ne.s32.totalorder %s54, %s57
      %p66 = scmp.eq.s32.totalorder %s23, 1
      %p67 = por %p65, %p66
      %p68 = scmp.ne.s32.totalorder %s57, %s58
      %p69 = scmp.eq.s32.totalorder %s23, 0
      %p70 = por %p68, %p69
      %p71 = scmp.ne.s32.totalorder %s57, %s58
      %p72 = scmp.eq.s32.totalorder %s24, 1
      %p73 = por %p71, %p72
      %p75 = scmp.ne.s32.totalorder %s58, %s74
      %p76 = scmp.eq.s32.totalorder %s24, 0
      %p77 = por %p75, %p76
      %s79 = sadd.s32 %s78, 1
      %p82 = scmp.eq.s32.totalorder %s18, 1
      %p83 = scmp.ne.s32.totalorder %s78, %s80
      %p84 = scmp.eq.s32.totalorder %s18, 0
      %p85 = por %p83, %p84
      %p86 = scmp.ne.s32.totalorder %s78, %s80
      %p87 = scmp.eq.s32.totalorder %s23, 1
      %p88 = por %p86, %p87
      %p89 = scmp.ne.s32.totalorder %s80, %s81
      %p90 = scmp.eq.s32.totalorder %s23, 0
      %p91 = por %p89, %p90
      %p92 = scmp.ne.s32.totalorder %s80, %s81
      %p93 = scmp.eq.s32.totalorder %s24, 1
      %p94 = por %p92, %p93
      %p96 = scmp.ne.s32.totalorder %s81, %s95
      %p97 = scmp.eq.s32.totalorder %s24, 0
      %p98 = por %p96, %p97
      %s99 = ssub.s32 %s18, %s25
      %p100 = scmp.eq.s32.totalorder %s99, 0
      %s102 = sadd.s32 %s101, 1
      %s103 = scalar_select %p100, %s101, %s102
      %p106 = pneg %p100
      %p107 = scmp.eq.s32.totalorder %s18, 1
      %p108 = por %p106, %p107
      %p109 = scmp.ne.s32.totalorder %s101, %s104
      %p110 = scmp.eq.s32.totalorder %s18, 0
      %p111 = por %p109, %p110
      %p112 = scmp.ne.s32.totalorder %s101, %s104
      %p113 = scmp.eq.s32.totalorder %s23, 1
      %p114 = por %p112, %p113
      %p115 = scmp.ne.s32.totalorder %s104, %s105
      %p116 = scmp.eq.s32.totalorder %s23, 0
      %p117 = por %p115, %p116
      %p118 = scmp.ne.s32.totalorder %s104, %s105
      %p119 = scmp.eq.s32.totalorder %s24, 1
      %p120 = por %p118, %p119
      %p122 = scmp.ne.s32.totalorder %s105, %s121
      %p123 = scmp.eq.s32.totalorder %s24, 0
      %p124 = por %p122, %p123
      %s125 = ssub.s32 %s18, %s25
      %p126 = scmp.eq.s32.totalorder %s125, 0
      %s128 = sadd.s32 %s127, 1
      %s129 = scalar_select %p126, %s127, %s128
      %p132 = pneg %p126
      %p133 = scmp.eq.s32.totalorder %s18, 1
      %p134 = por %p132, %p133
      %p135 = scmp.ne.s32.totalorder %s127, %s130
      %p136 = scmp.eq.s32.totalorder %s18, 0
      %p137 = por %p135, %p136
      %p138 = scmp.ne.s32.totalorder %s127, %s130
      %p139 = scmp.eq.s32.totalorder %s23, 1
      %p140 = por %p138, %p139
      %p141 = scmp.ne.s32.totalorder %s130, %s131
      %p142 = scmp.eq.s32.totalorder %s23, 0
      %p143 = por %p141, %p142
      %p144 = scmp.ne.s32.totalorder %s130, %s131
      %p145 = scmp.eq.s32.totalorder %s24, 1
      %p146 = por %p144, %p145
      %p148 = scmp.ne.s32.totalorder %s131, %s147
      %p149 = scmp.eq.s32.totalorder %s24, 0
      %p150 = por %p148, %p149
      %p151 = scmp.le.s32.totalorder 1, %s18
      %p152 = scmp.lt.s32.totalorder %s18, 3
      %p153 = pnand %p151, %p152
      %p154 = pneg %p153
      // Predicated region
      $region9: #{tpu_custom_call.1} parent=5 // pred_check
        _
      $region10: #{tpu_custom_call.1} parent=5 // pred_check_branch
        %156 = sbr.rel (%p153) target = $region12
      $region11: #{tpu_custom_call.1} parent=5 // pred_region
        %s157 = ssub.s32 %s18, 1
        // Predicated region
        $region13: #{tpu_custom_call.1} parent=11 // pred_check
          %p158 = pneg %p91
        $region14: #{tpu_custom_call.1} parent=11 // pred_check_branch
          %160 = sbr.rel (%p158) target = $region16
        $region15: #{tpu_custom_call.1} parent=11 // pred_region
          %s162 = ssub.s32 2048, 2048
          %163 = vsyncadd [#allocation3], %s162
          %s164 = sshll.u32 [#allocation2], 4
          %s165 = int_to_ptr.vmem [resolvable:$true] %s164
          %170 = dma.hbm_to_vmem [thread:$0]  %s2, 2048, %s165, [#allocation3], 128, 128, 8
        $region16: #{tpu_custom_call.1} parent=11 // pred_fallthru
          _
      $region12: #{tpu_custom_call.1} parent=5 // pred_fallthru
        _
      %p171 = scmp.lt.s32.totalorder %s18, 2
      // Predicated region
      $region17: #{tpu_custom_call.1} parent=5 // pred_check
        %p172 = pneg %p171
      $region18: #{tpu_custom_call.1} parent=5 // pred_check_branch
        %174 = sbr.rel (%p172) target = $region20
      $region19: #{tpu_custom_call.1} parent=5 // pred_region
        // Predicated region
        $region21: #{tpu_custom_call.1} parent=19 // pred_check
          %p175 = pneg %p38
        $region22: #{tpu_custom_call.1} parent=19 // pred_check_branch
          %177 = sbr.rel (%p175) target = $region24
        $region23: #{tpu_custom_call.1} parent=19 // pred_region
          %p178 = scmp.lt.s32.totalorder %s18, 1
          %s179 = scalar_select %p178, %s18, 1
          %s180 = smul.addr %s179, 8
          %s181 = scalar_lea.vmem %s0, %s180
        $region24: #{tpu_custom_call.1} parent=19 // pred_fallthru
          _
        // Predicated region
        $region25: #{tpu_custom_call.1} parent=19 // pred_check
          %p182 = pneg %p64
        $region26: #{tpu_custom_call.1} parent=19 // pred_check_branch
          %184 = sbr.rel (%p182) target = $region28
        $region27: #{tpu_custom_call.1} parent=19 // pred_region
          %p185 = scmp.lt.s32.totalorder %s18, 1
          %s186 = scalar_select %p185, %s18, 1
          %s187 = smul.addr %s186, 8
          %s188 = scalar_lea.vmem %s1, %s187
        $region28: #{tpu_custom_call.1} parent=19 // pred_fallthru
          _
      $region20: #{tpu_custom_call.1} parent=5 // pred_fallthru
        _
      %p189 = scmp.le.s32.totalorder 1, %s18
      %p190 = scmp.lt.s32.totalorder %s18, 3
      %p191 = pnand %p189, %p190
      %p192 = pneg %p191
      // Predicated region
      $region29: #{tpu_custom_call.1} parent=5 // pred_check
        _
      $region30: #{tpu_custom_call.1} parent=5 // pred_check_branch
        %194 = sbr.rel (%p191) target = $region32
      $region31: #{tpu_custom_call.1} parent=5 // pred_region
        %s195 = ssub.s32 %s18, 1
        // Predicated region
        $region33: #{tpu_custom_call.1} parent=31 // pred_check
          %p196 = pneg %p91
        $region34: #{tpu_custom_call.1} parent=31 // pred_check_branch
          %198 = sbr.rel (%p196) target = $region36
        $region35: #{tpu_custom_call.1} parent=31 // pred_region
          %199 = dma.done [#allocation3], 2048
        $region36: #{tpu_custom_call.1} parent=31 // pred_fallthru
          _
        %p200 = scmp.lt.s32.totalorder %s23, 1
        %s201 = scalar_select %p200, %s23, 1
        %s202 = smul.addr %s201, 8
        %s203 = scalar_lea.vmem %s0, %s202
        %p204 = pneg %p44
        %p205 = pneg %p41
        %p206 = scmp.lt.s32.totalorder %s23, 1
        %s207 = scalar_select %p206, %s23, 1
        %s208 = smul.addr %s207, 8
        %s209 = scalar_lea.vmem %s1, %s208
        %p210 = pneg %p70
        %p211 = pneg %p67
        %p212 = pneg %p91
        %p213 = pneg %p88
        %p214 = pneg %p117
        %p215 = pneg %p114
        %s216 = sand.u32 %s104, 1
        %s217 = scalar_lea.sflag [#allocation4], %s216
        %s218 = sand.u32 %s104, 1
        %s219 = smul.addr %s218, 8
        %s220 = scalar_lea.vmem [#allocation5], %s219
        %p221 = pneg %p143
        %p222 = pneg %p140
        %s223 = sand.u32 %s130, 1
        %s224 = scalar_lea.sflag [#allocation7], %s223
        %s225 = sand.u32 %s130, 1
        %s226 = scalar_lea.vmem [#allocation6], %s225
        %p227 = scmp.lt.s32.totalorder %s23, 1
        %s228 = scalar_select %p227, %s23, 1
        %s229 = smul.addr %s228, 8
        %s230 = scalar_lea.vmem %s0, %s229
        %p231 = scmp.lt.s32.totalorder %s23, 1
        %s232 = scalar_select %p231, %s23, 1
        %s233 = smul.addr %s232, 8
        %s234 = scalar_lea.vmem %s1, %s233
        %v235 = vld [vmem:[%s230] sm:$0xff]
        %v236 = vld [vmem:[#allocation2] sm:$0xff]
        %v237 = vld [vmem:[#allocation2 + $0x8] sm:$0xff]
        %v238 = vld [vmem:[#allocation2 + $0x10] sm:$0xff]
        %v239 = vld [vmem:[#allocation2 + $0x18] sm:$0xff]
        %v240 = vld [vmem:[#allocation2 + $0x20] sm:$0xff]
        %v241 = vld [vmem:[#allocation2 + $0x28] sm:$0xff]
        %v242 = vld [vmem:[#allocation2 + $0x30] sm:$0xff]
        %v243 = vld [vmem:[#allocation2 + $0x38] sm:$0xff]
        %v244 = vld [vmem:[#allocation2 + $0x40] sm:$0xff]
        %v245 = vld [vmem:[#allocation2 + $0x48] sm:$0xff]
        %v246 = vld [vmem:[#allocation2 + $0x50] sm:$0xff]
        %v247 = vld [vmem:[#allocation2 + $0x58] sm:$0xff]
        %v248 = vld [vmem:[#allocation2 + $0x60] sm:$0xff]
        %v249 = vld [vmem:[#allocation2 + $0x68] sm:$0xff]
        %v250 = vld [vmem:[#allocation2 + $0x70] sm:$0xff]
        %v251 = vld [vmem:[#allocation2 + $0x78] sm:$0xff]
        %v252 = vlaneseq
        %v253 = vand.u32 %v252, 127
        %254 = vset.pattern.permute.xlu0 0
        %255 = vperm.xlu0 %254, %v235
        %v256 = vpop.permute.xlu0 %255
        %vm257 = vcmp.eq.s32.totalorder %v253, %v256
        %v258 = vsel %vm257, 1, 0
        %v259 = vcvt.s32.f32 %v258
        %260 = vmatprep.subr.mxu0 0.0
        %261 = vmatpush1.msra.mxu0 %v251
        %262 = vmatprep.subr.mxu0 0.0
        %263 = vmatpush1.msra.mxu0 %v250
        %264 = vmatprep.subr.mxu0 0.0
        %265 = vmatpush1.msra.mxu0 %v249
        %266 = vmatprep.subr.mxu0 0.0
        %267 = vmatpush1.msra.mxu0 %v248
        %268 = vmatprep.subr.mxu0 0.0
        %269 = vmatpush1.msra.mxu0 %v247
        %270 = vmatprep.subr.mxu0 0.0
        %271 = vmatpush1.msra.mxu0 %v246
        %272 = vmatprep.subr.mxu0 0.0
        %273 = vmatpush1.msra.mxu0 %v245
        %274 = vmatprep.subr.mxu0 0.0
        %275 = vmatpush1.msra.mxu0 %v244
        %276 = vmatprep.subr.mxu0 0.0
        %277 = vmatpush1.msra.mxu0 %v243
        %278 = vmatprep.subr.mxu0 0.0
        %279 = vmatpush1.msra.mxu0 %v242
        %280 = vmatprep.subr.mxu0 0.0
        %281 = vmatpush1.msra.mxu0 %v241
        %282 = vmatprep.subr.mxu0 0.0
        %283 = vmatpush1.msra.mxu0 %v240
        %284 = vmatprep.subr.mxu0 0.0
        %285 = vmatpush1.msra.mxu0 %v239
        %286 = vmatprep.subr.mxu0 0.0
        %287 = vmatpush1.msra.mxu0 %v238
        %288 = vmatprep.subr.mxu0 0.0
        %289 = vmatpush1.msra.mxu0 %v237
        %290 = vmatprep.subr.mxu0 0.0
        %291 = vmatpush1.msra.mxu0 %v236
        %292 = vmatprep.subr.mxu0 0.0
        %293 = vmatpush2.msra.mxu0 0.0
        %294 = vmatprep.subr.mxu0 0.0
        %295 = vmatpush2.msra.mxu0 0.0
        %296 = vmatprep.subr.mxu0 0.0
        %297 = vmatpush2.msra.mxu0 0.0
        %298 = vmatprep.subr.mxu0 0.0
        %299 = vmatpush2.msra.mxu0 0.0
        %300 = vmatprep.subr.mxu0 0.0
        %301 = vmatpush2.msra.mxu0 0.0
        %302 = vmatprep.subr.mxu0 0.0
        %303 = vmatpush2.msra.mxu0 0.0
        %304 = vmatprep.subr.mxu0 0.0
        %305 = vmatpush2.msra.mxu0 0.0
        %306 = vmatprep.subr.mxu0 0.0
        %307 = vmatpush2.msra.mxu0 0.0
        %308 = vmatprep.subr.mxu0 0.0
        %309 = vmatpush2.msra.mxu0 0.0
        %310 = vmatprep.subr.mxu0 0.0
        %311 = vmatpush2.msra.mxu0 0.0
        %312 = vmatprep.subr.mxu0 0.0
        %313 = vmatpush2.msra.mxu0 0.0
        %314 = vmatprep.subr.mxu0 0.0
        %315 = vmatpush2.msra.mxu0 0.0
        %316 = vmatprep.subr.mxu0 0.0
        %317 = vmatpush2.msra.mxu0 0.0
        %318 = vmatprep.subr.mxu0 0.0
        %319 = vmatpush2.msra.mxu0 0.0
        %320 = vmatprep.subr.mxu0 0.0
        %321 = vmatpush2.msra.mxu0 0.0
        %322 = vmatprep.subr.mxu0 0.0
        %323 = vmatpush2.msra.mxu0 0.0
        %324 = vmatprep.mubr.f32.mxu0 0.0
        %325 = vmatmul.mubr.f32.gmra.mxu0 %v259
        %v326 = vpop.f32.mrf.mxu0
        %v327 = vadd.f32 0.0, %v326
        %v328 = vpop.f32.mrf.mxu0
        %329 = vdwg.mxu0
        %330 = vst [vmem:[%s220] sm:$0xff] %v327
        %v331 = vld [vmem:[%s234] sm:$0xff]
        %s332 = smul.u32 %s23, 8
        %333 = vmax.xlane.f32.xlu0 %v327
        %v334 = vpop.xlane.xlu0 %333
        %v335 = vsub.f32 %v327, %v334
        %v336 = vmul.f32 %v335, 1.442695
        %v337 = vpow.pop %v336
        %338 = vadd.xlane.f32.xlu0 %v337
        %v339 = vpop.xlane.xlu0 %338
        %v340 = vlog2.pop %v339
        %v341 = vmul.f32 %v340, 0.6931472
        %v342 = vadd.f32 %v334, %v341
        %343 = vset.pattern.permute.xlu0 0
        %344 = vperm.xlu0 %343, %v331
        %v345 = vpop.permute.xlu0 %344
        %vm346 = vcmp.eq.s32.totalorder %v253, %v345
        %v347 = vsel %vm346, %v327, 0.0
        %348 = vadd.xlane.f32.xlu0 %v347
        %v349 = vpop.xlane.xlu0 %348
        %v350 = vsub.f32 %v342, %v349
        %v351 = vlaneseq
        %v352 = vshrl.u32 %v351, 7
        %v353 = vstv %s332
        %v354 = vadd.s32 %v353, %v352
        %vm355 = vcmp.lt.s32.totalorder %v354, 16
        %v356 = vsel %vm355, %v350, 0.0
        %vm357 = vcmask 7168
        %v358 = vsel %vm357, %v356, 0.0
        %359 = vadd.xlane.f32.xlu0 %v358
        %v360 = vpop.xlane.xlu0 %359
        %v361 = vrot.slane %v360, 4
        %v362 = vadd.f32 %v360, %v361
        %v363 = vrot.slane %v362, 2
        %v364 = vadd.f32 %v362, %v363
        %v365 = vrot.slane %v364, 1
        %v366 = vadd.f32 %v364, %v365
        %s367 = vtos %v366
        %v368 = vstv %s367
        %369 = vst [vmem:[%s226] sm:$0x1] %v368
        %s370 = sand.u32 %s104, 1
        %s371 = scalar_lea.sflag [#allocation4], %s370
        %s372 = sand.u32 %s104, 1
        %s373 = smul.addr %s372, 8
        %s374 = scalar_lea.vmem [#allocation5], %s373
        %s375 = sand.u32 %s130, 1
        %s376 = scalar_lea.sflag [#allocation7], %s375
        %s377 = sand.u32 %s130, 1
        %s378 = scalar_lea.vmem [#allocation6], %s377
        // Predicated region
        $region37: #{tpu_custom_call.1} parent=31 // pred_check
          %p379 = pneg %p114
        $region38: #{tpu_custom_call.1} parent=31 // pred_check_branch
          %381 = sbr.rel (%p379) target = $region40
        $region39: #{tpu_custom_call.1} parent=31 // pred_region
          %s383 = ssub.s32 128, 128
          %384 = vsyncadd %s371, %s383
          %s385 = smul.addr %s23, 128
          %s386 = scalar_lea.hbm %s3, %s385
          %s388 = sshll.u32 %s374, 4
          %s389 = int_to_ptr.vmem [resolvable:$true] %s388
          %391 = dma.vmem_to_hbm [thread:$0]  %s389, 128, %s386, %s371
        $region40: #{tpu_custom_call.1} parent=31 // pred_fallthru
          _
        // Predicated region
        $region41: #{tpu_custom_call.1} parent=31 // pred_check
          %p392 = pneg %p140
        $region42: #{tpu_custom_call.1} parent=31 // pred_check_branch
          %394 = sbr.rel (%p392) target = $region44
        $region43: #{tpu_custom_call.1} parent=31 // pred_region
          %s396 = ssub.s32 16, 16
          %397 = vsyncadd %s376, %s396
          %s398 = smul.addr %s23, 16
          %s399 = scalar_lea.hbm %s4, %s398
          %s401 = sshll.u32 %s378, 4
          %s402 = int_to_ptr.vmem [resolvable:$true] %s401
          %404 = dma.vmem_to_hbm [thread:$0]  %s402, 16, %s399, %s376
        $region44: #{tpu_custom_call.1} parent=31 // pred_fallthru
          _
      $region32: #{tpu_custom_call.1} parent=5 // pred_fallthru
        _
      %p405 = scmp.le.s32.totalorder 2, %s18
      // Predicated region
      $region45: #{tpu_custom_call.1} parent=5 // pred_check
        %p406 = pneg %p405
      $region46: #{tpu_custom_call.1} parent=5 // pred_check_branch
        %408 = sbr.rel (%p406) target = $region48
      $region47: #{tpu_custom_call.1} parent=5 // pred_region
        %s409 = ssub.s32 %s18, 2
        // Predicated region
        $region49: #{tpu_custom_call.1} parent=47 // pred_check
          %p410 = pneg %p120
        $region50: #{tpu_custom_call.1} parent=47 // pred_check_branch
          %412 = sbr.rel (%p410) target = $region52
        $region51: #{tpu_custom_call.1} parent=47 // pred_region
          %s413 = sand.u32 %s105, 1
          %s414 = scalar_lea.sflag [#allocation4], %s413
          %s415 = sand.u32 %s105, 1
          %s416 = smul.addr %s415, 8
          %s417 = scalar_lea.vmem [#allocation5], %s416
          %418 = dma.done %s414, 128
        $region52: #{tpu_custom_call.1} parent=47 // pred_fallthru
          _
        // Predicated region
        $region53: #{tpu_custom_call.1} parent=47 // pred_check
          %p419 = pneg %p146
        $region54: #{tpu_custom_call.1} parent=47 // pred_check_branch
          %421 = sbr.rel (%p419) target = $region56
        $region55: #{tpu_custom_call.1} parent=47 // pred_region
          %s422 = sand.u32 %s131, 1
          %s423 = scalar_lea.sflag [#allocation7], %s422
          %s424 = sand.u32 %s131, 1
          %s425 = scalar_lea.vmem [#allocation6], %s424
          %426 = dma.done %s423, 16
        $region56: #{tpu_custom_call.1} parent=47 // pred_fallthru
          _
      $region48: #{tpu_custom_call.1} parent=5 // pred_fallthru
        _
    $region6: #{tpu_custom_call.1} parent=1 // loop_footer
      %s22 = sadd.s32 1, %s18
    $region7: #{tpu_custom_call.1} parent=1 // loop_footer_branch
      %17 = sbr.rel target = $region3
    $region8: #{tpu_custom_call.1} parent=1 // loop_exit
      _
    %427 = vsyncpa [#allocation3], 1
    %s428 = scalar_lea.sflag [#allocation3], 1
    %429 = vsyncpa %s428, 1
    %430 = vsyncpa [#allocation4], 1
    %s431 = scalar_lea.sflag [#allocation4], 1
    %432 = vsyncpa %s431, 1
    %433 = vsyncpa [#allocation7], 1
    %s434 = scalar_lea.sflag [#allocation7], 1
    %435 = vsyncpa %s434, 1

</llo_original>
